<compile_context>
chip_gen: v5e
topology: v5e:2x2
jax: 0.10.0
libtpu: 0.0.40
codegen_flags: <defaults>
</compile_context>

<pallas_src>
import functools

import jax
import jax.numpy as jnp
import numpy as np
from jax.experimental import pallas as pl
from jax.experimental.pallas import tpu as pltpu

LN_EPS = 1e-5  # PyTorch nn.LayerNorm default


def _round_up(x, m):
    return ((x + m - 1) // m) * m


# ---------------------------------------------------------------------------
# Tile-size helpers
# ---------------------------------------------------------------------------
def _pick_col_block(f, d, itemsize, budget_bytes=8 * 1024 * 1024):
    """N-tile for the projection weight so the double-buffered (D, tn) block
    stays under ~8 MiB (fits v7x's 32 MiB default scoped VMEM with room for
    the activation/output tiles)."""
    if 2 * d * f * itemsize <= budget_bytes:
        return f
    best = None
    for tn in range(128, f + 1, 128):
        if f % tn == 0 and 2 * d * tn * itemsize <= budget_bytes:
            best = tn
    return best if best is not None else f


def _pick_core_blocks(t, dh, itemsize, budget_bytes=12 * 1024 * 1024):
    """(s_block, q_block) for the core: divisors of T, sublane-aligned
    (multiples of 8) when possible, sized so the per-step VMEM working set
    (double-buffered (5,T,Dh) input + (T,Dh) output + f32 softmax state +
    ab/de/logits/p tiles) stays within the budget."""
    divs = [v for v in range(1, t + 1) if t % v == 0]
    cand = [v for v in divs if v % 8 == 0] or divs
    fixed = 12 * t * dh * itemsize + t * (dh + 2) * 4

    def cost(ts, tq):
        # ab + de builds (f32 + mxu copies) and logits + p (f32)
        return fixed + ts * t * dh * (8 + 2 * itemsize) + 8 * ts * t * tq

    best = None
    for tq in cand:
        if tq > 256:
            continue
        for ts in cand:
            if cost(ts, tq) > budget_bytes:
                continue
            key = (ts * tq, ts)
            if best is None or key > best[0]:
                best = (key, ts, tq)
    if best is None:
        # Very large T: even the smallest aligned blocks exceed the budget.
        return cand[0], cand[0]
    return best[1], best[2]


# ---------------------------------------------------------------------------
# Kernels 1 & 3: (LayerNorm +) Linear, B*T-fused rows, N-tiled weight
# ---------------------------------------------------------------------------
def _ln_linear_kernel(x_ref, g_ref, b_ref, w_ref, bias_ref, o_ref, *, mxu_dtype):
    x = x_ref[...].astype(jnp.float32)                       # (tm, D)
    mu = jnp.mean(x, axis=-1, keepdims=True)
    xc = x - mu
    var = jnp.mean(xc * xc, axis=-1, keepdims=True)          # biased var (PyTorch LN)
    xn = xc * jax.lax.rsqrt(var + LN_EPS)
    xn = xn * g_ref[...].astype(jnp.float32) + b_ref[...].astype(jnp.float32)
    y = jnp.dot(xn.astype(mxu_dtype), w_ref[...], preferred_element_type=jnp.float32)
    o_ref[...] = (y + bias_ref[...].astype(jnp.float32)).astype(o_ref.dtype)


def _linear_kernel(x_ref, w_ref, bias_ref, o_ref, *, mxu_dtype):
    y = jnp.dot(x_ref[...].astype(mxu_dtype), w_ref[...],
                preferred_element_type=jnp.float32)
    o_ref[...] = (y + bias_ref[...].astype(jnp.float32)).astype(o_ref.dtype)


def _tiled_linear(x2, w, bias, *, out_dtype, mxu_dtype, gamma=None, beta=None):
    """y = [LN](x2) @ w + bias.  Grid = (N-tiles, row-tiles); rows innermost so
    each (D, tn) weight tile is fetched once per N-tile.  Ragged row counts are
    padded to the row tile (and sliced off) instead of a full-extent tile."""
    m, d = x2.shape
    f = w.shape[1]
    itemsize = jnp.dtype(mxu_dtype).itemsize
    tm = 256 if m >= 256 else _round_up(m, 8)
    mp = _round_up(m, tm)
    if mp != m:
        x2 = jnp.pad(x2, ((0, mp - m), (0, 0)))
    tn = _pick_col_block(f, d, itemsize)
    grid = (f // tn, mp // tm)
    w = w.astype(mxu_dtype)

    if gamma is not None:
        kernel = functools.partial(_ln_linear_kernel, mxu_dtype=mxu_dtype)
        operands = (x2, gamma, beta, w, bias)
        in_specs = [
            pl.BlockSpec((tm, d), lambda j, i: (i, 0)),
            pl.BlockSpec((1, d), lambda j, i: (0, 0)),
            pl.BlockSpec((1, d), lambda j, i: (0, 0)),
            pl.BlockSpec((d, tn), lambda j, i: (0, j)),
            pl.BlockSpec((1, tn), lambda j, i: (0, j)),
        ]
    else:
        kernel = functools.partial(_linear_kernel, mxu_dtype=mxu_dtype)
        operands = (x2, w, bias)
        in_specs = [
            pl.BlockSpec((tm, d), lambda j, i: (i, 0)),
            pl.BlockSpec((d, tn), lambda j, i: (0, j)),
            pl.BlockSpec((1, tn), lambda j, i: (0, j)),
        ]

    out = pl.pallas_call(
        kernel,
        out_shape=jax.ShapeDtypeStruct((mp, f), out_dtype),
        grid=grid,
        in_specs=in_specs,
        out_specs=pl.BlockSpec((tm, tn), lambda j, i: (i, j)),
        compiler_params=pltpu.CompilerParams(
            dimension_semantics=("parallel", "parallel"),
            vmem_limit_bytes=32 * 1024 * 1024),
    )(*operands)
    return out[:m] if mp != m else out


# ---------------------------------------------------------------------------
# Kernel 2: trittention core, grid (B, H)
#   score[q, s, t] = <a[s] * b[t], c[q]> / Dh      (pair index = s*T + t)
#   P = softmax over (s, t);  z[q] = sum_{s,t} P[q,s,t] * (d[s] + e[t])
# ---------------------------------------------------------------------------
def _tritt_core_kernel(proj_ref, o_ref, acc_sc, m_sc, l_sc, *,
                       T, Dh, Ts, Tq, mxu_dtype, approx_recip):
    n_sb = T // Ts
    n_qb = T // Tq
    inv_dh = jnp.float32(1.0 / Dh)

    # online-softmax state for all q rows (persisted across the s-block loop)
    acc_sc[...] = jnp.zeros(acc_sc.shape, jnp.float32)
    l_sc[...] = jnp.zeros(l_sc.shape, jnp.float32)
    m_sc[...] = jnp.full(m_sc.shape, -1e30, jnp.float32)

    @pl.loop(0, n_sb)
    def _s_loop(sb):
        s0 = pl.multiple_of(sb * Ts, Ts)
        a_blk = proj_ref[0, 0, 0, pl.ds(s0, Ts), :]                  # (Ts, Dh)
        b_all = proj_ref[0, 0, 1, :, :]                              # (T,  Dh)
        d_blk = proj_ref[0, 0, 3, pl.ds(s0, Ts), :].astype(jnp.float32)
        e_all = proj_ref[0, 0, 4, :, :].astype(jnp.float32)

        # pair "keys" and pair "values" for this s-block (reused by all q-tiles)
        ab = (a_blk[:, None, :] * b_all[None, :, :]).reshape(Ts * T, Dh)
        ab = ab.astype(mxu_dtype)                                    # (Ts*T, Dh)
        de = (d_blk[:, None, :] + e_all[None, :, :]).reshape(Ts * T, Dh)
        de = de.astype(mxu_dtype)                                    # (Ts*T, Dh)

        @pl.loop(0, n_qb)
        def _q_loop(qb):
            q0 = pl.multiple_of(qb * Tq, Tq)
            # 1/dim_head score scale folded into c (Tq*Dh mults, not T^3 divides)
            c_blk = (proj_ref[0, 0, 2, pl.ds(q0, Tq), :].astype(jnp.float32)
                     * inv_dh).astype(mxu_dtype)                     # (Tq, Dh)
            logits = jax.lax.dot_general(                            # (Tq, Ts*T)
                c_blk, ab, (((1,), (1,)), ((), ())),
                preferred_element_type=jnp.float32)

            m_old = m_sc[pl.ds(q0, Tq), :]
            l_old = l_sc[pl.ds(q0, Tq), :]
            acc_old = acc_sc[pl.ds(q0, Tq), :]

            m_new = jnp.maximum(m_old, jnp.max(logits, axis=-1, keepdims=True))
            alpha = jnp.exp(m_old - m_new)
            p = jnp.exp(logits - m_new)                              # (Tq, Ts*T)

            m_sc[pl.ds(q0, Tq), :] = m_new
            l_sc[pl.ds(q0, Tq), :] = alpha * l_old + jnp.sum(p, axis=-1,
                                                             keepdims=True)
            # full (s, t) marginalisation in ONE MXU matmul: p @ (d[s] + e[t])
            acc_sc[pl.ds(q0, Tq), :] = alpha * acc_old + jnp.dot(
                p.astype(mxu_dtype), de, preferred_element_type=jnp.float32)

    l = l_sc[...]
    inv_l = pl.reciprocal(l, approx=True) if approx_recip else 1.0 / l
    o_ref[0, 0, :, :] = (acc_sc[...] * inv_l).astype(o_ref.dtype)


def trittention_core(proj_bh, *, s_block, q_block, mxu_dtype):
    B, H, five, T, Dh = proj_bh.shape
    assert five == 5 and T % s_block == 0 and T % q_block == 0
    approx_recip = jnp.dtype(mxu_dtype) == jnp.dtype(jnp.bfloat16)
    kernel = functools.partial(_tritt_core_kernel, T=T, Dh=Dh, Ts=s_block,
                               Tq=q_block, mxu_dtype=mxu_dtype,
                               approx_recip=approx_recip)
    return pl.pallas_call(
        kernel,
        out_shape=jax.ShapeDtypeStruct((B, H, T, Dh), proj_bh.dtype),
        grid=(B, H),
        in_specs=[pl.BlockSpec((1, 1, 5, T, Dh), lambda b, h: (b, h, 0, 0, 0))],
        out_specs=pl.BlockSpec((1, 1, T, Dh), lambda b, h: (b, h, 0, 0)),
        scratch_shapes=[pltpu.VMEM((T, Dh), jnp.float32),
                        pltpu.VMEM((T, 1), jnp.float32),
                        pltpu.VMEM((T, 1), jnp.float32)],
        compiler_params=pltpu.CompilerParams(
            dimension_semantics=("parallel", "parallel"),
            vmem_limit_bytes=32 * 1024 * 1024),
    )(proj_bh)


# ---------------------------------------------------------------------------
# Full module forward (Pallas) and a pure-JAX reference of the PyTorch math
# ---------------------------------------------------------------------------
def trittention_forward(x, params, heads, dim_head, *,
                        mxu_dtype=jnp.float32, s_block=None, q_block=None):
    B, T, D = x.shape
    H, Dh = heads, dim_head
    HD, M = H * Dh, B * T
    storage = jnp.dtype(mxu_dtype)
    itemsize = storage.itemsize

    x2 = x.reshape(M, D)                                             # free reshape
    proj2 = _tiled_linear(x2, params["w_abcde"], params["b_abcde"],
                          out_dtype=storage, mxu_dtype=mxu_dtype,
                          gamma=params["gamma"], beta=params["beta"])  # (M, 5*HD)
    # One small XLA transpose so every core grid step DMAs one contiguous
    # (5, T, Dh) slab (heads on the grid, per-field DMA-side slicing).
    proj_bh = proj2.reshape(B, T, 5, H, Dh).transpose(0, 3, 2, 1, 4)   # (B,H,5,T,Dh)

    ts, tq = _pick_core_blocks(T, Dh, itemsize)
    if s_block is not None:
        ts = s_block
    if q_block is not None:
        tq = q_block
    z = trittention_core(proj_bh, s_block=ts, q_block=tq,
                         mxu_dtype=mxu_dtype)                          # (B,H,T,Dh)

    z2 = z.transpose(0, 2, 1, 3).reshape(M, HD)                        # (M, HD)
    out2 = _tiled_linear(z2, params["w_out"], params["b_out"],
                         out_dtype=x.dtype, mxu_dtype=mxu_dtype)       # (M, D)
    return out2.reshape(B, T, D)


def trittention_reference(x, params, heads, dim_head):
    B, T, D = x.shape
    H, Dh = heads, dim_head
    mu = x.mean(-1, keepdims=True)
    var = ((x - mu) ** 2).mean(-1, keepdims=True)
    xn = (x - mu) / jnp.sqrt(var + LN_EPS)
    xn = xn * params["gamma"][0] + params["beta"][0]
    proj = xn @ params["w_abcde"] + params["b_abcde"][0]
    a, b, c, d, e = jnp.split(proj, 5, axis=-1)
    a, b, c, d, e = (t.reshape(B, T, H, Dh) for t in (a, b, c, d, e))
    score = jnp.einsum('bsnh,btnh,bqnh->bnstq', a, b, c)
    score = score.transpose(0, 1, 4, 2, 3).reshape(B, H, T, T * T) / Dh
    attn = jax.nn.softmax(score, axis=-1).reshape(B, H, T, T, T)
    z = jnp.einsum('bnqlr,blnd->bnqd', attn, d) + jnp.einsum('bnqlr,brnd->bnqd', attn, e)
    z = z.transpose(0, 2, 1, 3).reshape(B, T, H * Dh)
    return z @ params["w_out"] + params["b_out"][0]


if __name__ == "__main__":
    B, T, DIM = 2, 16, 32
    HEADS, DIM_HEAD = 4, 8
    F = 5 * HEADS * DIM_HEAD

    key = jax.random.PRNGKey(0)
    ks = jax.random.split(key, 7)
    x = jax.random.normal(ks[0], (B, T, DIM), dtype=jnp.float32)

    params = {
        "gamma":   1.0 + 0.1 * jax.random.normal(ks[1], (1, DIM), jnp.float32),
        "beta":    0.1 * jax.random.normal(ks[2], (1, DIM), jnp.float32),
        "w_abcde": 0.1 * jax.random.normal(ks[3], (DIM, F), jnp.float32),
        "b_abcde": 0.1 * jax.random.normal(ks[4], (1, F), jnp.float32),
        "w_out":   0.1 * jax.random.normal(ks[5], (HEADS * DIM_HEAD, DIM), jnp.float32),
        "b_out":   0.1 * jax.random.normal(ks[6], (1, DIM), jnp.float32),
    }

    ref = jax.block_until_ready(trittention_reference(x, params, HEADS, DIM_HEAD))

    # f32 path, auto-picked blocks (single s/q block at this T).
    out = jax.block_until_ready(trittention_forward(x, params, HEADS, DIM_HEAD))
    assert out.shape == (B, T, DIM), out.shape
    np.testing.assert_allclose(np.asarray(out), np.asarray(ref), rtol=5e-3, atol=5e-3)

    # f32 path with forced s/q blocking -> exercises the online-softmax loops.
    out_blk = jax.block_until_ready(
        trittention_forward(x, params, HEADS, DIM_HEAD, s_block=8, q_block=8))
    np.testing.assert_allclose(np.asarray(out_blk), np.asarray(ref), rtol=5e-3, atol=5e-3)

    # bf16 storage / MXU-operand path (v6e/v7x): f32 accumulation + f32 stats.
    out_bf16 = jax.block_until_ready(
        trittention_forward(x, params, HEADS, DIM_HEAD, mxu_dtype=jnp.bfloat16))
    np.testing.assert_allclose(np.asarray(out_bf16), np.asarray(ref), rtol=1e-1, atol=1e-1)

    print("KERNEL_OK")
</pallas_src>

<mosaic_0001>
module attributes {stable_mosaic.version = 11 : i64} {
  func.func @_ln_linear_kernel(%arg0: i32, %arg1: i32, %arg2: memref<32x32xf32, #tpu.memory_space<vmem>>, %arg3: memref<1x32xf32, #tpu.memory_space<vmem>>, %arg4: memref<1x32xf32, #tpu.memory_space<vmem>>, %arg5: memref<32x160xf32, #tpu.memory_space<vmem>>, %arg6: memref<1x160xf32, #tpu.memory_space<vmem>>, %arg7: memref<32x160xf32, #tpu.memory_space<vmem>>) attributes {dimension_semantics = [#tpu.dimension_semantics<parallel>, #tpu.dimension_semantics<parallel>], iteration_bounds = array<i64: 1, 1>, scalar_prefetch = 0 : i64, scratch_operands = 0 : i64, tpu.core_type = #tpu.core_type<tc>, window_params = [{transform_indices = @transform_0, window_bounds = array<i64: 32, 32>}, {pipeline_mode = #tpu.pipeline_mode<synchronous>, transform_indices = @transform_1, window_bounds = array<i64: 1, 32>}, {pipeline_mode = #tpu.pipeline_mode<synchronous>, transform_indices = @transform_2, window_bounds = array<i64: 1, 32>}, {transform_indices = @transform_3, window_bounds = array<i64: 32, 160>}, {transform_indices = @transform_4, window_bounds = array<i64: 1, 160>}, {transform_indices = @transform_5, window_bounds = array<i64: 32, 160>}]} {
    %c0 = arith.constant 0 : index
    %c0_0 = arith.constant 0 : index
    %0 = vector.load %arg2[%c0, %c0_0] : memref<32x32xf32, #tpu.memory_space<vmem>>, vector<32x32xf32>
    %cst = arith.constant dense<0.000000e+00> : vector<32xf32>
    %1 = vector.multi_reduction <add>, %0, %cst [1] : vector<32x32xf32> to vector<32xf32>
    %2 = vector.shape_cast %1 : vector<32xf32> to vector<32x1xf32>
    %cst_1 = arith.constant 3.200000e+01 : f32
    %3 = vector.broadcast %cst_1 : f32 to vector<32x1xf32>
    %4 = arith.divf %2, %3 : vector<32x1xf32>
    %5 = vector.broadcast %4 : vector<32x1xf32> to vector<32x32xf32>
    %6 = arith.subf %0, %5 : vector<32x32xf32>
    %7 = arith.mulf %6, %6 : vector<32x32xf32>
    %cst_2 = arith.constant dense<0.000000e+00> : vector<32xf32>
    %8 = vector.multi_reduction <add>, %7, %cst_2 [1] : vector<32x32xf32> to vector<32xf32>
    %9 = vector.shape_cast %8 : vector<32xf32> to vector<32x1xf32>
    %cst_3 = arith.constant 3.200000e+01 : f32
    %10 = vector.broadcast %cst_3 : f32 to vector<32x1xf32>
    %11 = arith.divf %9, %10 : vector<32x1xf32>
    %cst_4 = arith.constant 9.99999974E-6 : f32
    %12 = vector.broadcast %cst_4 : f32 to vector<32x1xf32>
    %13 = arith.addf %11, %12 : vector<32x1xf32>
    %14 = math.rsqrt %13 : vector<32x1xf32>
    %15 = vector.broadcast %14 : vector<32x1xf32> to vector<32x32xf32>
    %16 = arith.mulf %6, %15 : vector<32x32xf32>
    %c0_5 = arith.constant 0 : index
    %c0_6 = arith.constant 0 : index
    %17 = vector.load %arg3[%c0_5, %c0_6] : memref<1x32xf32, #tpu.memory_space<vmem>>, vector<1x32xf32>
    %18 = vector.broadcast %17 : vector<1x32xf32> to vector<32x32xf32>
    %19 = arith.mulf %16, %18 : vector<32x32xf32>
    %c0_7 = arith.constant 0 : index
    %c0_8 = arith.constant 0 : index
    %20 = vector.load %arg4[%c0_7, %c0_8] : memref<1x32xf32, #tpu.memory_space<vmem>>, vector<1x32xf32>
    %21 = vector.broadcast %20 : vector<1x32xf32> to vector<32x32xf32>
    %22 = arith.addf %19, %21 : vector<32x32xf32>
    %c0_9 = arith.constant 0 : index
    %c0_10 = arith.constant 0 : index
    %23 = vector.load %arg5[%c0_9, %c0_10] : memref<32x160xf32, #tpu.memory_space<vmem>>, vector<32x160xf32>
    %cst_11 = arith.constant dense<0.000000e+00> : vector<32x160xf32>
    %24 = tpu.matmul %22, %23, %cst_11 {dimension_numbers = #tpu.dot_dimension_numbers<[1], [0], [0], [1], [0, 0, 1, 1], [], []>} : vector<32x32xf32>, vector<32x160xf32>, vector<32x160xf32> -> vector<32x160xf32>
    %c0_12 = arith.constant 0 : index
    %c0_13 = arith.constant 0 : index
    %25 = vector.load %arg6[%c0_12, %c0_13] : memref<1x160xf32, #tpu.memory_space<vmem>>, vector<1x160xf32>
    %26 = vector.broadcast %25 : vector<1x160xf32> to vector<32x160xf32>
    %27 = arith.addf %24, %26 : vector<32x160xf32>
    %c0_14 = arith.constant 0 : index
    %c0_15 = arith.constant 0 : index
    %28 = vector.load %arg7[%c0_14, %c0_15] : memref<32x160xf32, #tpu.memory_space<vmem>>, vector<32x160xf32>
    tpu.vector_store %arg7[%c0_14, %c0_15], %27 {strides = array<i32>} : memref<32x160xf32, #tpu.memory_space<vmem>>, vector<32x160xf32>,
    return
  }
  func.func @transform_0(%arg0: i32, %arg1: i32) -> (i32, i32) {
    %c0_i32 = arith.constant 0 : i32
    %c0_i32_0 = arith.constant 0 : i32
    return %arg1, %c0_i32 : i32, i32
  }
  func.func @transform_1(%arg0: i32, %arg1: i32) -> (i32, i32) {
    %c0_i32 = arith.constant 0 : i32
    %c0_i32_0 = arith.constant 0 : i32
    %c0_i32_1 = arith.constant 0 : i32
    return %c0_i32, %c0_i32_0 : i32, i32
  }
  func.func @transform_2(%arg0: i32, %arg1: i32) -> (i32, i32) {
    %c0_i32 = arith.constant 0 : i32
    %c0_i32_0 = arith.constant 0 : i32
    %c0_i32_1 = arith.constant 0 : i32
    return %c0_i32, %c0_i32_0 : i32, i32
  }
  func.func @transform_3(%arg0: i32, %arg1: i32) -> (i32, i32) {
    %c0_i32 = arith.constant 0 : i32
    %c0_i32_0 = arith.constant 0 : i32
    return %c0_i32, %arg0 : i32, i32
  }
  func.func @transform_4(%arg0: i32, %arg1: i32) -> (i32, i32) {
    %c0_i32 = arith.constant 0 : i32
    %c0_i32_0 = arith.constant 0 : i32
    return %c0_i32, %arg0 : i32, i32
  }
  func.func @transform_5(%arg0: i32, %arg1: i32) -> (i32, i32) {
    %c0_i32 = arith.constant 0 : i32
    return %arg1, %arg0 : i32, i32
  }
}

</mosaic_0001>

<llo_original>
// kernel: tpu_custom_call.1
$region0: #{tpu_custom_call.1}
  #allocation0 [shape = 'u32[]', space=smem, size = 0x4, offset = 0x4, fixed_abs, tag = 'smem constant byte address 0x4 - core index']
  #allocation1 [shape = 'u32[72,128]{1,0:T(1,128)}', space=vmem, size = 0x9000, scoped, tag = 'internal scratch']
  %s0 = inlined_call_operand.hbm [shape: f32[32,32], index: 0, kind: input, shape index: {}]
  %s1 = inlined_call_operand.hbm [shape: f32[1,32], index: 1, kind: input, shape index: {}]
  %s2 = inlined_call_operand.vmem [shape: f32[1,32], index: 2, kind: input, shape index: {}]
  %s3 = inlined_call_operand.hbm [shape: f32[32,160], index: 3, kind: input, shape index: {}]
  %s4 = inlined_call_operand.vmem [shape: f32[1,160], index: 4, kind: input, shape index: {}]
  %s5 = inlined_call_operand.hbm [shape: f32[32,160], index: 5, kind: output, shape index: {}]
  %s6 = sld [smem:[#allocation0]]
  $region42: #{tpu_custom_call.1} parent=0
    _
  %s8 = ssub.s32 1, %s6
  %s9 = scalar_select 0, %s8, %s6
  $region1: #{tpu_custom_call.1} parent=0
    #allocation2 [shape = 'u8[16384]{0}', space=vmem, size = 0x4000, scoped, tag = 'input window, operand 0, single buffered']
    #allocation3 [shape = 's32[1]{0}', space=sflag, size = 0x4, scoped, tag = 'scoped memory for tpu_custom_call.1']
    #allocation4 [shape = 's32[1]{0}', space=sflag, size = 0x4, scoped, tag = 'scoped memory for tpu_custom_call.1']
    #allocation5 [shape = 'u8[512]{0}', space=vmem, size = 0x400, scoped, tag = 'input window, operand 1, single buffered']
    #allocation6 [shape = 's32[1]{0}', space=sflag, size = 0x4, scoped, tag = 'scoped memory for tpu_custom_call.1']
    #allocation7 [shape = 'u8[32768]{0}', space=vmem, size = 0x8000, scoped, tag = 'input window, operand 3, single buffered']
    #allocation8 [shape = 'u8[32768]{0}', space=vmem, size = 0x8000, scoped, tag = 'output window, operand 0, single buffered']
    %10 = vsyncpa [#allocation3], 0
    %11 = vsyncpa [#allocation6], 0
    %12 = vsyncpa [#allocation4], 0
    // Predicated region
    $region2: #{tpu_custom_call.1} parent=1 // pred_check
      _
    $region3: #{tpu_custom_call.1} parent=1 // pred_check_branch
      %14 = sbr.rel (0) target = $region5
    $region4: #{tpu_custom_call.1} parent=1 // pred_region
      %16 = vsyncadd [#allocation3], 0
      %s17 = sshll.u32 %s0, 4
      %s18 = int_to_ptr.hbm [resolvable:$true] %s17
      %s19 = sshll.u32 [#allocation2], 4
      %s20 = int_to_ptr.vmem [resolvable:$true] %s19
      %25 = dma.hbm_to_vmem [thread:$0]  %s18, 512, %s20, [#allocation3], 128, 128, 8
    $region5: #{tpu_custom_call.1} parent=1 // pred_fallthru
      _
    // Predicated region
    $region6: #{tpu_custom_call.1} parent=1 // pred_check
      _
    $region7: #{tpu_custom_call.1} parent=1 // pred_check_branch
      %27 = sbr.rel (0) target = $region9
    $region8: #{tpu_custom_call.1} parent=1 // pred_region
      %29 = vsyncadd [#allocation6], 0
      %s31 = sshll.u32 %s1, 4
      %s32 = int_to_ptr.hbm [resolvable:$true] %s31
      %s33 = sshll.u32 [#allocation5], 4
      %s34 = int_to_ptr.vmem [resolvable:$true] %s33
      %36 = dma.hbm_to_vmem [thread:$0]  %s32, 16, %s34, [#allocation6]
    $region9: #{tpu_custom_call.1} parent=1 // pred_fallthru
      _
    // Predicated region
    $region10: #{tpu_custom_call.1} parent=1 // pred_check
      _
    $region11: #{tpu_custom_call.1} parent=1 // pred_check_branch
      %38 = sbr.rel (0) target = $region13
    $region12: #{tpu_custom_call.1} parent=1 // pred_region
      _
    $region13: #{tpu_custom_call.1} parent=1 // pred_fallthru
      _
    // Predicated region
    $region14: #{tpu_custom_call.1} parent=1 // pred_check
      _
    $region15: #{tpu_custom_call.1} parent=1 // pred_check_branch
      %40 = sbr.rel (0) target = $region17
    $region16: #{tpu_custom_call.1} parent=1 // pred_region
      %42 = vsyncadd [#allocation6], 0
      %s43 = sshll.u32 %s3, 4
      %s44 = int_to_ptr.hbm [resolvable:$true] %s43
      %s45 = sshll.u32 [#allocation7], 4
      %s46 = int_to_ptr.vmem [resolvable:$true] %s45
      %51 = dma.hbm_to_vmem [thread:$0]  %s44, 1024, %s46, [#allocation6], 256, 256, 16
    $region17: #{tpu_custom_call.1} parent=1 // pred_fallthru
      _
    // Predicated region
    $region18: #{tpu_custom_call.1} parent=1 // pred_check
      _
    $region19: #{tpu_custom_call.1} parent=1 // pred_check_branch
      %53 = sbr.rel (0) target = $region21
    $region20: #{tpu_custom_call.1} parent=1 // pred_region
      _
    $region21: #{tpu_custom_call.1} parent=1 // pred_fallthru
      _
    // Predicated region
    $region22: #{tpu_custom_call.1} parent=1 // pred_check
      _
    $region23: #{tpu_custom_call.1} parent=1 // pred_check_branch
      %55 = sbr.rel (0) target = $region25
    $region24: #{tpu_custom_call.1} parent=1 // pred_region
      %57 = dma.done [#allocation3], 512
    $region25: #{tpu_custom_call.1} parent=1 // pred_fallthru
      _
    // Predicated region
    $region26: #{tpu_custom_call.1} parent=1 // pred_check
      _
    $region27: #{tpu_custom_call.1} parent=1 // pred_check_branch
      %59 = sbr.rel (0) target = $region29
    $region28: #{tpu_custom_call.1} parent=1 // pred_region
      %61 = dma.done [#allocation6], 16
    $region29: #{tpu_custom_call.1} parent=1 // pred_fallthru
      _
    // Predicated region
    $region30: #{tpu_custom_call.1} parent=1 // pred_check
      _
    $region31: #{tpu_custom_call.1} parent=1 // pred_check_branch
      %63 = sbr.rel (0) target = $region33
    $region32: #{tpu_custom_call.1} parent=1 // pred_region
      %65 = dma.done [#allocation6], 1024
    $region33: #{tpu_custom_call.1} parent=1 // pred_fallthru
      _
    %v66 = vld [vmem:[#allocation2] sm:$0xff]
    %v67 = vld [vmem:[#allocation2 + $0x8] sm:$0xff]
    %v68 = vld [vmem:[#allocation2 + $0x10] sm:$0xff]
    %v69 = vld [vmem:[#allocation2 + $0x18] sm:$0xff]
    %vm70 = vcmask 261120
    %v71 = vsel %vm70, %v66, 0.0
    %72 = vadd.xlane.f32.xlu0 %v71
    %v73 = vpop.xlane.xlu0 %72
    %v74 = vsel %vm70, %v67, 0.0
    %75 = vadd.xlane.f32.xlu0 %v74
    %v76 = vpop.xlane.xlu0 %75
    %v77 = vsel %vm70, %v68, 0.0
    %78 = vadd.xlane.f32.xlu0 %v77
    %v79 = vpop.xlane.xlu0 %78
    %v80 = vsel %vm70, %v69, 0.0
    %81 = vadd.xlane.f32.xlu0 %v80
    %v82 = vpop.xlane.xlu0 %81
    %v83 = vrcp.pop 32.0
    %v84 = vmul.f32 32.0, %v83
    %v85 = vsub.f32 1.0, %v84
    %v86 = vmul.f32 %v83, %v85
    %v87 = vadd.f32 %v83, %v86
    %vm88 = vweird.f32 %v83
    %v89 = vsel %vm88, %v83, %v87
    %v90 = vmul.f32 %v73, %v89
    %v91 = vmul.f32 %v76, %v89
    %v92 = vmul.f32 %v79, %v89
    %v93 = vmul.f32 %v82, %v89
    %v94 = vsub.f32 %v66, %v90
    %v95 = vsub.f32 %v67, %v91
    %v96 = vsub.f32 %v68, %v92
    %v97 = vsub.f32 %v69, %v93
    %v98 = vmul.f32 %v94, %v94
    %v99 = vmul.f32 %v95, %v95
    %v100 = vmul.f32 %v96, %v96
    %v101 = vmul.f32 %v97, %v97
    %v102 = vsel %vm70, %v98, 0.0
    %103 = vadd.xlane.f32.xlu0 %v102
    %v104 = vpop.xlane.xlu0 %103
    %v105 = vsel %vm70, %v99, 0.0
    %106 = vadd.xlane.f32.xlu0 %v105
    %v107 = vpop.xlane.xlu0 %106
    %v108 = vsel %vm70, %v100, 0.0
    %109 = vadd.xlane.f32.xlu0 %v108
    %v110 = vpop.xlane.xlu0 %109
    %v111 = vsel %vm70, %v101, 0.0
    %112 = vadd.xlane.f32.xlu0 %v111
    %v113 = vpop.xlane.xlu0 %112
    %v114 = vmul.f32 %v104, %v89
    %v115 = vmul.f32 %v107, %v89
    %v116 = vmul.f32 %v110, %v89
    %v117 = vmul.f32 %v113, %v89
    %v118 = vadd.f32 %v114, 1e-05
    %v119 = vadd.f32 %v115, 1e-05
    %v120 = vadd.f32 %v116, 1e-05
    %v121 = vadd.f32 %v117, 1e-05
    %v122 = vrsqrt.pop %v118
    %v123 = vmul.f32 %v122, %v118
    %v124 = vmul.f32 %v123, %v122
    %v125 = vmul.f32 0.5, %v124
    %v126 = vsub.f32 1.5, %v125
    %v127 = vmul.f32 %v122, %v126
    %vm128 = vweird.f32 %v118
    %vm129 = vweird.f32 %v122
    %vm130 = vmor %vm128, %vm129
    %v131 = vsel %vm130, %v122, %v127
    %v132 = vrsqrt.pop %v119
    %v133 = vmul.f32 %v132, %v119
    %v134 = vmul.f32 %v133, %v132
    %v135 = vmul.f32 0.5, %v134
    %v136 = vsub.f32 1.5, %v135
    %v137 = vmul.f32 %v132, %v136
    %vm138 = vweird.f32 %v119
    %vm139 = vweird.f32 %v132
    %vm140 = vmor %vm138, %vm139
    %v141 = vsel %vm140, %v132, %v137
    %v142 = vrsqrt.pop %v120
    %v143 = vmul.f32 %v142, %v120
    %v144 = vmul.f32 %v143, %v142
    %v145 = vmul.f32 0.5, %v144
    %v146 = vsub.f32 1.5, %v145
    %v147 = vmul.f32 %v142, %v146
    %vm148 = vweird.f32 %v120
    %vm149 = vweird.f32 %v142
    %vm150 = vmor %vm148, %vm149
    %v151 = vsel %vm150, %v142, %v147
    %v152 = vrsqrt.pop %v121
    %v153 = vmul.f32 %v152, %v121
    %v154 = vmul.f32 %v153, %v152
    %v155 = vmul.f32 0.5, %v154
    %v156 = vsub.f32 1.5, %v155
    %v157 = vmul.f32 %v152, %v156
    %vm158 = vweird.f32 %v121
    %vm159 = vweird.f32 %v152
    %vm160 = vmor %vm158, %vm159
    %v161 = vsel %vm160, %v152, %v157
    %v162 = vmul.f32 %v94, %v131
    %v163 = vmul.f32 %v95, %v141
    %v164 = vmul.f32 %v96, %v151
    %v165 = vmul.f32 %v97, %v161
    %v166 = vld [vmem:[#allocation5] sm:$0x1]
    %v168 = vperm.slane %v166, 0
    %v170 = vmul.f32 %v162, %v168
    %v171 = vmul.f32 %v163, %v168
    %v172 = vmul.f32 %v164, %v168
    %v173 = vmul.f32 %v165, %v168
    %v174 = vld [vmem:[%s2] sm:$0x1]
    %v176 = vperm.slane %v174, 0
    %v178 = vadd.f32 %v170, %v176
    %v179 = vadd.f32 %v171, %v176
    %v180 = vadd.f32 %v172, %v176
    %v181 = vadd.f32 %v173, %v176
    %v182 = vld [vmem:[#allocation7] sm:$0xff]
    %v183 = vld [vmem:[#allocation7 + $0x8] sm:$0xff]
    %v184 = vld [vmem:[#allocation7 + $0x10] sm:$0xff]
    %v185 = vld [vmem:[#allocation7 + $0x18] sm:$0xff]
    %v186 = vld [vmem:[#allocation7 + $0x20] sm:$0xff]
    %v187 = vld [vmem:[#allocation7 + $0x28] sm:$0xff]
    %v188 = vld [vmem:[#allocation7 + $0x30] sm:$0xff]
    %v189 = vld [vmem:[#allocation7 + $0x38] sm:$0xff]
    %v190 = vld [vmem:[%s4] sm:$0x3]
    %v192 = vperm.slane %v190, 0
    %v193 = vperm.slane %v190, 1
    %v197 = vsel %vm70, %v178, 0
    %v200 = vsel %vm70, %v179, 0
    %v203 = vsel %vm70, %v180, 0
    %v206 = vsel %vm70, %v181, 0
    %208 = vmatpush.msra.mxu0 0.0
    %209 = vmatpush.msra.mxu0 0.0
    %210 = vmatpush.msra.mxu0 0.0
    %211 = vmatpush.msra.mxu0 0.0
    %212 = vmatpush.msra.mxu0 0.0
    %213 = vmatpush.msra.mxu0 0.0
    %214 = vmatpush.msra.mxu0 0.0
    %215 = vmatpush.msra.mxu0 0.0
    %216 = vmatpush.msra.mxu0 0.0
    %217 = vmatpush.msra.mxu0 0.0
    %218 = vmatpush.msra.mxu0 0.0
    %219 = vmatpush.msra.mxu0 0.0
    %220 = vmatpush.msra.mxu0 %v188
    %221 = vmatpush.msra.mxu0 %v186
    %222 = vmatpush.msra.mxu0 %v184
    %223 = vmatpush.msra.mxu0 %v182
    %224 = vmatmul.f32.gmra.mxu0 %v197
    %v225 = vpop.f32.mrf.mxu0
    %v226 = vadd.f32 %v192, %v225
    %227 = vmatmul.f32.gmra.mxu0 %v200
    %v228 = vpop.f32.mrf.mxu0
    %v229 = vadd.f32 %v192, %v228
    %230 = vmatmul.f32.gmra.mxu0 %v203
    %v231 = vpop.f32.mrf.mxu0
    %v232 = vadd.f32 %v192, %v231
    %233 = vmatmul.f32.gmra.mxu0 %v206
    %v234 = vpop.f32.mrf.mxu0
    %v235 = vadd.f32 %v192, %v234
    %236 = vdwg.mxu0
    %237 = vmatpush.msra.mxu0 0.0
    %238 = vmatpush.msra.mxu0 0.0
    %239 = vmatpush.msra.mxu0 0.0
    %240 = vmatpush.msra.mxu0 0.0
    %241 = vmatpush.msra.mxu0 0.0
    %242 = vmatpush.msra.mxu0 0.0
    %243 = vmatpush.msra.mxu0 0.0
    %244 = vmatpush.msra.mxu0 0.0
    %245 = vmatpush.msra.mxu0 0.0
    %246 = vmatpush.msra.mxu0 0.0
    %247 = vmatpush.msra.mxu0 0.0
    %248 = vmatpush.msra.mxu0 0.0
    %249 = vmatpush.msra.mxu0 %v189
    %250 = vmatpush.msra.mxu0 %v187
    %251 = vmatpush.msra.mxu0 %v185
    %252 = vmatpush.msra.mxu0 %v183
    %253 = vmatmul.f32.gmra.mxu0 %v197
    %v254 = vpop.f32.mrf.mxu0
    %v255 = vadd.f32 %v193, %v254
    %256 = vmatmul.f32.gmra.mxu0 %v200
    %v257 = vpop.f32.mrf.mxu0
    %v258 = vadd.f32 %v193, %v257
    %259 = vmatmul.f32.gmra.mxu0 %v203
    %v260 = vpop.f32.mrf.mxu0
    %v261 = vadd.f32 %v193, %v260
    %262 = vmatmul.f32.gmra.mxu0 %v206
    %v263 = vpop.f32.mrf.mxu0
    %v264 = vadd.f32 %v193, %v263
    %265 = vdwg.mxu0
    %266 = vst [vmem:[#allocation8] sm:$0xff] %v226
    %267 = vst.msk [vmem:[#allocation8 + $0x8] sm:$0xff] %vm70, %v255
    %268 = vst [vmem:[#allocation8 + $0x10] sm:$0xff] %v229
    %269 = vst.msk [vmem:[#allocation8 + $0x18] sm:$0xff] %vm70, %v258
    %270 = vst [vmem:[#allocation8 + $0x20] sm:$0xff] %v232
    %271 = vst.msk [vmem:[#allocation8 + $0x28] sm:$0xff] %vm70, %v261
    %272 = vst [vmem:[#allocation8 + $0x30] sm:$0xff] %v235
    %273 = vst.msk [vmem:[#allocation8 + $0x38] sm:$0xff] %vm70, %v264
    // Predicated region
    $region34: #{tpu_custom_call.1} parent=1 // pred_check
      _
    $region35: #{tpu_custom_call.1} parent=1 // pred_check_branch
      %275 = sbr.rel (0) target = $region37
    $region36: #{tpu_custom_call.1} parent=1 // pred_region
      %277 = vsyncadd [#allocation4], 0
      %s278 = sshll.u32 [#allocation8], 4
      %s279 = int_to_ptr.vmem [resolvable:$true] %s278
      %s280 = sshll.u32 %s5, 4
      %s281 = int_to_ptr.hbm [resolvable:$true] %s280
      %286 = dma.vmem_to_hbm [thread:$0]  %s279, 1024, %s281, [#allocation4], 256, 256, 16
    $region37: #{tpu_custom_call.1} parent=1 // pred_fallthru
      _
    // Predicated region
    $region38: #{tpu_custom_call.1} parent=1 // pred_check
      _
    $region39: #{tpu_custom_call.1} parent=1 // pred_check_branch
      %288 = sbr.rel (0) target = $region41
    $region40: #{tpu_custom_call.1} parent=1 // pred_region
      %290 = dma.done [#allocation4], 1024
    $region41: #{tpu_custom_call.1} parent=1 // pred_fallthru
      _
    %291 = vsyncpa [#allocation3], 1
    %292 = vsyncpa [#allocation6], 1
    %293 = vsyncpa [#allocation4], 1

</llo_original>
